<compile_context>
chip_gen: v6e
topology: v6e:2x2x1
jax: 0.10.0
libtpu: 0.0.40
codegen_flags: <defaults>
</compile_context>

<pallas_src>
import jax
import jax.numpy as jnp
from jax.experimental import pallas as pl
from jax.experimental.pallas import tpu as pltpu

_LANES = 128


def _round_up(v, m):
    return (v + m - 1) // m * m


# ----------------------------------------------------------------------------
# Builder: computes the slab layout, returns (pack_params, forward)
# ----------------------------------------------------------------------------
def make_forward(input_dim, hidden_dim, encoded_dim, num_classes, num_nodes):
    layer_specs = (
        ("enc1", input_dim, hidden_dim, "dense"),
        ("enc2", hidden_dim, hidden_dim, "dense"),
        ("enc3", hidden_dim, encoded_dim, "dense"),
        ("dec1", encoded_dim, hidden_dim, "dense"),
        ("dec2", hidden_dim, hidden_dim, "dense"),
        ("dec3", hidden_dim, input_dim, "dense"),
        ("conv1", encoded_dim, 64, "sage"),
        ("conv2", 64, 64, "sage"),
        ("conv3", 64, 32, "sage"),
        ("fc", 32, num_classes, "dense"),
    )

    # ---- weight-slab layout (bf16, row offsets multiples of 16, 128 lanes) ----
    w_layout = {}
    row = 0
    for name, fin, fout, kind in layer_specs:
        cols = 2 * fout if kind == "sage" else fout   # SAGE stores [Wl | Wr]
        assert cols <= _LANES, f"{name}: fused output width {cols} > {_LANES}"
        w_layout[name] = (row, fin, cols)
        row += _round_up(fin, 16)
    w_rows = _round_up(row, 16)

    # ---- bias-slab layout (f32, one row per layer) ----
    b_layout = {name: (i, fout) for i, (name, _, fout, _) in enumerate(layer_specs)}
    b_rows = _round_up(len(layer_specs), 8)

    # ------------------------------------------------------------------------
    # One-time parameter prep: concat Wl|Wr, pack into bf16 / f32 slabs.
    # ------------------------------------------------------------------------
    def pack_params(params):
        w_slab = jnp.zeros((w_rows, _LANES), jnp.float32)
        b_slab = jnp.zeros((b_rows, _LANES), jnp.float32)
        for name, fin, fout, kind in layer_specs:
            off, _, cols = w_layout[name]
            if kind == "sage":
                wl, wr, b = params[name]
                w = jnp.concatenate([wl, wr], axis=1)
            else:
                w, b = params[name]
            w_slab = w_slab.at[off:off + fin, 0:cols].set(w)
            brow, bw = b_layout[name]
            b_slab = b_slab.at[brow, 0:bw].set(jnp.reshape(b, (-1,)))
        return w_slab.astype(jnp.bfloat16), b_slab

    # ------------------------------------------------------------------------
    # Fused forward kernel: 4 inputs, 2 outputs, no grid.
    # ------------------------------------------------------------------------
    def kernel(x_ref, adj_ref, w_ref, b_ref, out_ref, ae_ref):
        f32, bf16 = jnp.float32, jnp.bfloat16

        def wslice(name):
            off, fin, cols = w_layout[name]
            return w_ref[off:off + fin, 0:cols]          # static VMEM view, bf16

        def bslice(name):
            brow, bw = b_layout[name]
            return b_ref[brow:brow + 1, 0:bw]            # (1, fout) f32

        def dense(h_bf, name, act):
            y = jnp.dot(h_bf, wslice(name), preferred_element_type=f32)
            y = y + bslice(name)
            if act == "relu":
                return jnp.maximum(y, 0.0)
            return jax.nn.sigmoid(y)

        adj_bf = adj_ref[...]                            # already bf16, no cast

        def sage_relu(h_bf, name):
            """relu( A @ (h@Wl) + h@Wr + b ) with one fused weight matmul."""
            _, _, cols = w_layout[name]
            f_out = cols // 2
            both = jnp.dot(h_bf, wslice(name), preferred_element_type=f32)
            t = both[:, :f_out].astype(bf16)             # h @ Wl
            root = both[:, f_out:]                       # h @ Wr
            neigh = jnp.dot(adj_bf, t, preferred_element_type=f32)
            return jnp.maximum(neigh + root + bslice(name), 0.0)

        x_bf = x_ref[...]

        # --- Autoencoder encoder (Dropout = identity in eval mode) ---
        h = dense(x_bf, "enc1", "relu")
        h = dense(h.astype(bf16), "enc2", "relu")
        encoded = dense(h.astype(bf16), "enc3", "relu")

        # --- Autoencoder decoder ---
        enc_bf = encoded.astype(bf16)
        d = dense(enc_bf, "dec1", "relu")
        d = dense(d.astype(bf16), "dec2", "relu")
        decoded = dense(d.astype(bf16), "dec3", "sigmoid")

        # Single packed writeback: [encoded | decoded]  -> (N, enc+in)
        ae_ref[...] = jnp.concatenate([encoded, decoded], axis=1)

        # --- GraphSAGE stack on encoded features ---
        g = sage_relu(enc_bf, "conv1")
        g = sage_relu(g.astype(bf16), "conv2")
        g = sage_relu(g.astype(bf16), "conv3")

        # --- mean over nodes -> fc -> sigmoid ---
        m = jnp.mean(g, axis=0, keepdims=True)           # (1, 32)
        logits = jnp.dot(m.astype(bf16), wslice("fc"),
                         preferred_element_type=f32) + bslice("fc")
        out_ref[...] = jax.nn.sigmoid(logits)

    # ---- advisory cost estimate (lets XLA overlap this cheap custom call) ----
    n = num_nodes
    flops = 0
    for name, fin, fout, kind in layer_specs:
        if kind == "sage":
            flops += 2 * n * fin * (2 * fout) + 2 * n * n * fout
        else:
            rows = 1 if name == "fc" else n
            flops += 2 * rows * fin * fout
    transcendentals = n * input_dim + num_classes         # sigmoid count
    bytes_accessed = (w_rows * _LANES * 2 + b_rows * _LANES * 4
                      + n * input_dim * 2 + n * n * 2
                      + n * (encoded_dim + input_dim) * 4 + num_classes * 4)

    vmem_spec = pl.BlockSpec(memory_space=pltpu.MemorySpace.VMEM)
    call = pl.pallas_call(
        kernel,
        out_shape=(
            jax.ShapeDtypeStruct((1, num_classes), jnp.float32),
            jax.ShapeDtypeStruct((num_nodes, encoded_dim + input_dim), jnp.float32),
        ),
        in_specs=[vmem_spec] * 4,
        out_specs=(vmem_spec, vmem_spec),
        cost_estimate=pl.CostEstimate(flops=flops,
                                      transcendentals=transcendentals,
                                      bytes_accessed=bytes_accessed),
    )

    def forward(w_slab, b_slab, x_bf16, adj_bf16):
        out, ae = call(x_bf16, adj_bf16, w_slab, b_slab)
        # The torch module's forward returns only the classifier output;
        # encoded / decoded are sliced out of the packed buffer for inspection.
        return out, ae[:, :encoded_dim], ae[:, encoded_dim:]

    return pack_params, forward


# ----------------------------------------------------------------------------
# Parameter construction (deterministic, synthetic, f32 "torch-like" params)
# ----------------------------------------------------------------------------
def _dense_params(key, f_in, f_out):
    kw, kb = jax.random.split(key)
    scale = 1.0 / jnp.sqrt(jnp.float32(f_in))
    w = jax.random.uniform(kw, (f_in, f_out), jnp.float32, -scale, scale)
    b = jax.random.uniform(kb, (1, f_out), jnp.float32, -scale, scale)
    return w, b


def init_params(key, input_dim, hidden_dim, encoded_dim, num_classes):
    keys = jax.random.split(key, 16)
    p = {}
    # Autoencoder encoder: in->hid, hid->hid, hid->enc (ReLU each)
    p["enc1"] = _dense_params(keys[0], input_dim, hidden_dim)
    p["enc2"] = _dense_params(keys[1], hidden_dim, hidden_dim)
    p["enc3"] = _dense_params(keys[2], hidden_dim, encoded_dim)
    # Autoencoder decoder: enc->hid, hid->hid, hid->in (ReLU, ReLU, Sigmoid)
    p["dec1"] = _dense_params(keys[3], encoded_dim, hidden_dim)
    p["dec2"] = _dense_params(keys[4], hidden_dim, hidden_dim)
    p["dec3"] = _dense_params(keys[5], hidden_dim, input_dim)
    # SAGEConv layers: lin_l (with bias) on aggregated neighbours,
    # lin_r (no bias) on root features.
    for name, (fi, fo), k in (
        ("conv1", (encoded_dim, 64), keys[6]),
        ("conv2", (64, 64), keys[7]),
        ("conv3", (64, 32), keys[8]),
    ):
        k1, k2 = jax.random.split(k)
        wl, bl = _dense_params(k1, fi, fo)
        wr, _ = _dense_params(k2, fi, fo)
        p[name] = (wl, wr, bl)
    # Final classifier
    p["fc"] = _dense_params(keys[9], 32, num_classes)
    return p


def build_mean_adjacency(edge_index, num_nodes):
    """Dense row-normalized adjacency (bf16) for mean neighbourhood aggregation.

    edge_index: (2, E) int32, row 0 = source j, row 1 = target i.
    out[i] aggregates mean_{j : (j->i)} x[j]; isolated targets aggregate to 0.
    """
    src, dst = edge_index[0], edge_index[1]
    adj = jnp.zeros((num_nodes, num_nodes), jnp.float32)
    adj = adj.at[dst, src].add(1.0)
    deg = adj.sum(axis=1, keepdims=True)
    return (adj / jnp.maximum(deg, 1.0)).astype(jnp.bfloat16)


# ----------------------------------------------------------------------------
# Main
# ----------------------------------------------------------------------------
if __name__ == "__main__":
    INPUT_DIM = 32
    HIDDEN_DIM = 32
    ENCODED_DIM = 16
    NUM_CLASSES = 4
    NUM_NODES = 16
    NUM_EDGES = 48

    root = jax.random.PRNGKey(0)
    k_x, k_src, k_dst, k_params = jax.random.split(root, 4)

    # Node feature matrix (data.x) and random directed edges (data.edge_index)
    x = jax.random.uniform(k_x, (NUM_NODES, INPUT_DIM), jnp.float32)
    edge_index = jnp.stack(
        [
            jax.random.randint(k_src, (NUM_EDGES,), 0, NUM_NODES),
            jax.random.randint(k_dst, (NUM_EDGES,), 0, NUM_NODES),
        ],
        axis=0,
    ).astype(jnp.int32)

    params = init_params(k_params, INPUT_DIM, HIDDEN_DIM, ENCODED_DIM, NUM_CLASSES)

    # One-time prep: build kernel + slab layout, pack params once (bf16/f32).
    pack_params, forward = make_forward(
        INPUT_DIM, HIDDEN_DIM, ENCODED_DIM, NUM_CLASSES, NUM_NODES)
    w_slab, b_slab = jax.block_until_ready(pack_params(params))

    # Data prep: bf16 node features + bf16 row-normalized adjacency (no
    # per-call convert HLOs inside the forward path).
    x_bf = x.astype(jnp.bfloat16)
    adj_bf = build_mean_adjacency(edge_index, NUM_NODES)

    fwd = jax.jit(forward)
    out, encoded, decoded = fwd(w_slab, b_slab, x_bf, adj_bf)
    jax.block_until_ready((out, encoded, decoded))

    assert out.shape == (1, NUM_CLASSES)
    assert encoded.shape == (NUM_NODES, ENCODED_DIM)
    assert decoded.shape == (NUM_NODES, INPUT_DIM)
    assert bool(jnp.all(jnp.isfinite(out)))
    assert bool(jnp.all((out >= 0.0) & (out <= 1.0)))
    print("KERNEL_OK")
</pallas_src>

<mosaic_0001>
module attributes {stable_mosaic.version = 11 : i64} {
  func.func @kernel(%arg0: memref<16x32xbf16, #tpu.memory_space<vmem>>, %arg1: memref<16x16xbf16, #tpu.memory_space<vmem>>, %arg2: memref<352x128xbf16, #tpu.memory_space<vmem>>, %arg3: memref<16x128xf32, #tpu.memory_space<vmem>>, %arg4: memref<1x4xf32, #tpu.memory_space<vmem>>, %arg5: memref<16x48xf32, #tpu.memory_space<vmem>>) attributes {dimension_semantics = [], scalar_prefetch = 0 : i64, scratch_operands = 0 : i64, tpu.core_type = #tpu.core_type<tc>} {
    %c0 = arith.constant 0 : index
    %c0_0 = arith.constant 0 : index
    %0 = vector.load %arg1[%c0, %c0_0] : memref<16x16xbf16, #tpu.memory_space<vmem>>, vector<16x16xbf16>
    %c0_1 = arith.constant 0 : index
    %c0_2 = arith.constant 0 : index
    %1 = vector.load %arg0[%c0_1, %c0_2] : memref<16x32xbf16, #tpu.memory_space<vmem>>, vector<16x32xbf16>
    %c0_3 = arith.constant 0 : index
    %c0_4 = arith.constant 0 : index
    %2 = vector.load %arg2[%c0_3, %c0_4] : memref<352x128xbf16, #tpu.memory_space<vmem>>, vector<32x32xbf16>
    %cst = arith.constant dense<0.000000e+00> : vector<16x32xf32>
    %3 = tpu.matmul %1, %2, %cst {dimension_numbers = #tpu.dot_dimension_numbers<[1], [0], [0], [1], [0, 0, 1, 1], [], []>} : vector<16x32xbf16>, vector<32x32xbf16>, vector<16x32xf32> -> vector<16x32xf32>
    %c0_5 = arith.constant 0 : index
    %c0_6 = arith.constant 0 : index
    %4 = vector.load %arg3[%c0_5, %c0_6] : memref<16x128xf32, #tpu.memory_space<vmem>>, vector<1x32xf32>
    %5 = vector.broadcast %4 : vector<1x32xf32> to vector<16x32xf32>
    %6 = arith.addf %3, %5 : vector<16x32xf32>
    %cst_7 = arith.constant 0.000000e+00 : f32
    %7 = vector.broadcast %cst_7 : f32 to vector<16x32xf32>
    %8 = arith.maximumf %6, %7 : vector<16x32xf32>
    %9 = arith.truncf %8 : vector<16x32xf32> to vector<16x32xbf16>
    %c32 = arith.constant 32 : index
    %c0_8 = arith.constant 0 : index
    %10 = vector.load %arg2[%c32, %c0_8] : memref<352x128xbf16, #tpu.memory_space<vmem>>, vector<32x32xbf16>
    %cst_9 = arith.constant dense<0.000000e+00> : vector<16x32xf32>
    %11 = tpu.matmul %9, %10, %cst_9 {dimension_numbers = #tpu.dot_dimension_numbers<[1], [0], [0], [1], [0, 0, 1, 1], [], []>} : vector<16x32xbf16>, vector<32x32xbf16>, vector<16x32xf32> -> vector<16x32xf32>
    %c1 = arith.constant 1 : index
    %c0_10 = arith.constant 0 : index
    %12 = vector.load %arg3[%c1, %c0_10] : memref<16x128xf32, #tpu.memory_space<vmem>>, vector<1x32xf32>
    %13 = vector.broadcast %12 : vector<1x32xf32> to vector<16x32xf32>
    %14 = arith.addf %11, %13 : vector<16x32xf32>
    %cst_11 = arith.constant 0.000000e+00 : f32
    %15 = vector.broadcast %cst_11 : f32 to vector<16x32xf32>
    %16 = arith.maximumf %14, %15 : vector<16x32xf32>
    %17 = arith.truncf %16 : vector<16x32xf32> to vector<16x32xbf16>
    %c64 = arith.constant 64 : index
    %c0_12 = arith.constant 0 : index
    %18 = vector.load %arg2[%c64, %c0_12] : memref<352x128xbf16, #tpu.memory_space<vmem>>, vector<32x16xbf16>
    %cst_13 = arith.constant dense<0.000000e+00> : vector<16x16xf32>
    %19 = tpu.matmul %17, %18, %cst_13 {dimension_numbers = #tpu.dot_dimension_numbers<[1], [0], [0], [1], [0, 0, 1, 1], [], []>} : vector<16x32xbf16>, vector<32x16xbf16>, vector<16x16xf32> -> vector<16x16xf32>
    %c2 = arith.constant 2 : index
    %c0_14 = arith.constant 0 : index
    %20 = vector.load %arg3[%c2, %c0_14] : memref<16x128xf32, #tpu.memory_space<vmem>>, vector<1x16xf32>
    %21 = vector.broadcast %20 : vector<1x16xf32> to vector<16x16xf32>
    %22 = arith.addf %19, %21 : vector<16x16xf32>
    %cst_15 = arith.constant 0.000000e+00 : f32
    %23 = vector.broadcast %cst_15 : f32 to vector<16x16xf32>
    %24 = arith.maximumf %22, %23 : vector<16x16xf32>
    %25 = arith.truncf %24 : vector<16x16xf32> to vector<16x16xbf16>
    %c96 = arith.constant 96 : index
    %c0_16 = arith.constant 0 : index
    %26 = vector.load %arg2[%c96, %c0_16] : memref<352x128xbf16, #tpu.memory_space<vmem>>, vector<16x32xbf16>
    %cst_17 = arith.constant dense<0.000000e+00> : vector<16x32xf32>
    %27 = tpu.matmul %25, %26, %cst_17 {dimension_numbers = #tpu.dot_dimension_numbers<[1], [0], [0], [1], [0, 0, 1, 1], [], []>} : vector<16x16xbf16>, vector<16x32xbf16>, vector<16x32xf32> -> vector<16x32xf32>
    %c3 = arith.constant 3 : index
    %c0_18 = arith.constant 0 : index
    %28 = vector.load %arg3[%c3, %c0_18] : memref<16x128xf32, #tpu.memory_space<vmem>>, vector<1x32xf32>
    %29 = vector.broadcast %28 : vector<1x32xf32> to vector<16x32xf32>
    %30 = arith.addf %27, %29 : vector<16x32xf32>
    %cst_19 = arith.constant 0.000000e+00 : f32
    %31 = vector.broadcast %cst_19 : f32 to vector<16x32xf32>
    %32 = arith.maximumf %30, %31 : vector<16x32xf32>
    %33 = arith.truncf %32 : vector<16x32xf32> to vector<16x32xbf16>
    %c112 = arith.constant 112 : index
    %c0_20 = arith.constant 0 : index
    %34 = vector.load %arg2[%c112, %c0_20] : memref<352x128xbf16, #tpu.memory_space<vmem>>, vector<32x32xbf16>
    %cst_21 = arith.constant dense<0.000000e+00> : vector<16x32xf32>
    %35 = tpu.matmul %33, %34, %cst_21 {dimension_numbers = #tpu.dot_dimension_numbers<[1], [0], [0], [1], [0, 0, 1, 1], [], []>} : vector<16x32xbf16>, vector<32x32xbf16>, vector<16x32xf32> -> vector<16x32xf32>
    %c4 = arith.constant 4 : index
    %c0_22 = arith.constant 0 : index
    %36 = vector.load %arg3[%c4, %c0_22] : memref<16x128xf32, #tpu.memory_space<vmem>>, vector<1x32xf32>
    %37 = vector.broadcast %36 : vector<1x32xf32> to vector<16x32xf32>
    %38 = arith.addf %35, %37 : vector<16x32xf32>
    %cst_23 = arith.constant 0.000000e+00 : f32
    %39 = vector.broadcast %cst_23 : f32 to vector<16x32xf32>
    %40 = arith.maximumf %38, %39 : vector<16x32xf32>
    %41 = arith.truncf %40 : vector<16x32xf32> to vector<16x32xbf16>
    %c144 = arith.constant 144 : index
    %c0_24 = arith.constant 0 : index
    %42 = vector.load %arg2[%c144, %c0_24] : memref<352x128xbf16, #tpu.memory_space<vmem>>, vector<32x32xbf16>
    %cst_25 = arith.constant dense<0.000000e+00> : vector<16x32xf32>
    %43 = tpu.matmul %41, %42, %cst_25 {dimension_numbers = #tpu.dot_dimension_numbers<[1], [0], [0], [1], [0, 0, 1, 1], [], []>} : vector<16x32xbf16>, vector<32x32xbf16>, vector<16x32xf32> -> vector<16x32xf32>
    %c5 = arith.constant 5 : index
    %c0_26 = arith.constant 0 : index
    %44 = vector.load %arg3[%c5, %c0_26] : memref<16x128xf32, #tpu.memory_space<vmem>>, vector<1x32xf32>
    %45 = vector.broadcast %44 : vector<1x32xf32> to vector<16x32xf32>
    %46 = arith.addf %43, %45 : vector<16x32xf32>
    %47 = arith.negf %46 : vector<16x32xf32>
    %48 = math.exp %47 : vector<16x32xf32>
    %cst_27 = arith.constant 1.000000e+00 : f32
    %49 = vector.broadcast %cst_27 : f32 to vector<16x32xf32>
    %50 = arith.addf %49, %48 : vector<16x32xf32>
    %51 = arith.divf %49, %50 : vector<16x32xf32>
    %52 = tpu.concatenate %24, %51 in 1 : vector<16x16xf32>, vector<16x32xf32> -> vector<16x48xf32>
    %c0_28 = arith.constant 0 : index
    %c0_29 = arith.constant 0 : index
    %53 = vector.load %arg5[%c0_28, %c0_29] : memref<16x48xf32, #tpu.memory_space<vmem>>, vector<16x48xf32>
    tpu.vector_store %arg5[%c0_28, %c0_29], %52 {strides = array<i32>} : memref<16x48xf32, #tpu.memory_space<vmem>>, vector<16x48xf32>,
    %c176 = arith.constant 176 : index
    %c0_30 = arith.constant 0 : index
    %54 = vector.load %arg2[%c176, %c0_30] : memref<352x128xbf16, #tpu.memory_space<vmem>>, vector<16x128xbf16>
    %cst_31 = arith.constant dense<0.000000e+00> : vector<16x128xf32>
    %55 = tpu.matmul %25, %54, %cst_31 {dimension_numbers = #tpu.dot_dimension_numbers<[1], [0], [0], [1], [0, 0, 1, 1], [], []>} : vector<16x16xbf16>, vector<16x128xbf16>, vector<16x128xf32> -> vector<16x128xf32>
    %56 = vector.extract_strided_slice %55 {offsets = [0, 0], sizes = [16, 64], strides = [1, 1]} : vector<16x128xf32> to vector<16x64xf32>
    %57 = arith.truncf %56 : vector<16x64xf32> to vector<16x64xbf16>
    %58 = vector.extract_strided_slice %55 {offsets = [0, 64], sizes = [16, 64], strides = [1, 1]} : vector<16x128xf32> to vector<16x64xf32>
    %cst_32 = arith.constant dense<0.000000e+00> : vector<16x64xf32>
    %59 = tpu.matmul %0, %57, %cst_32 {dimension_numbers = #tpu.dot_dimension_numbers<[1], [0], [0], [1], [0, 0, 1, 1], [], []>} : vector<16x16xbf16>, vector<16x64xbf16>, vector<16x64xf32> -> vector<16x64xf32>
    %60 = arith.addf %59, %58 : vector<16x64xf32>
    %c6 = arith.constant 6 : index
    %c0_33 = arith.constant 0 : index
    %61 = vector.load %arg3[%c6, %c0_33] : memref<16x128xf32, #tpu.memory_space<vmem>>, vector<1x64xf32>
    %62 = vector.broadcast %61 : vector<1x64xf32> to vector<16x64xf32>
    %63 = arith.addf %60, %62 : vector<16x64xf32>
    %cst_34 = arith.constant 0.000000e+00 : f32
    %64 = vector.broadcast %cst_34 : f32 to vector<16x64xf32>
    %65 = arith.maximumf %63, %64 : vector<16x64xf32>
    %66 = arith.truncf %65 : vector<16x64xf32> to vector<16x64xbf16>
    %c192 = arith.constant 192 : index
    %c0_35 = arith.constant 0 : index
    %67 = vector.load %arg2[%c192, %c0_35] : memref<352x128xbf16, #tpu.memory_space<vmem>>, vector<64x128xbf16>
    %cst_36 = arith.constant dense<0.000000e+00> : vector<16x128xf32>
    %68 = tpu.matmul %66, %67, %cst_36 {dimension_numbers = #tpu.dot_dimension_numbers<[1], [0], [0], [1], [0, 0, 1, 1], [], []>} : vector<16x64xbf16>, vector<64x128xbf16>, vector<16x128xf32> -> vector<16x128xf32>
    %69 = vector.extract_strided_slice %68 {offsets = [0, 0], sizes = [16, 64], strides = [1, 1]} : vector<16x128xf32> to vector<16x64xf32>
    %70 = arith.truncf %69 : vector<16x64xf32> to vector<16x64xbf16>
    %71 = vector.extract_strided_slice %68 {offsets = [0, 64], sizes = [16, 64], strides = [1, 1]} : vector<16x128xf32> to vector<16x64xf32>
    %cst_37 = arith.constant dense<0.000000e+00> : vector<16x64xf32>
    %72 = tpu.matmul %0, %70, %cst_37 {dimension_numbers = #tpu.dot_dimension_numbers<[1], [0], [0], [1], [0, 0, 1, 1], [], []>} : vector<16x16xbf16>, vector<16x64xbf16>, vector<16x64xf32> -> vector<16x64xf32>
    %73 = arith.addf %72, %71 : vector<16x64xf32>
    %c7 = arith.constant 7 : index
    %c0_38 = arith.constant 0 : index
    %74 = vector.load %arg3[%c7, %c0_38] : memref<16x128xf32, #tpu.memory_space<vmem>>, vector<1x64xf32>
    %75 = vector.broadcast %74 : vector<1x64xf32> to vector<16x64xf32>
    %76 = arith.addf %73, %75 : vector<16x64xf32>
    %cst_39 = arith.constant 0.000000e+00 : f32
    %77 = vector.broadcast %cst_39 : f32 to vector<16x64xf32>
    %78 = arith.maximumf %76, %77 : vector<16x64xf32>
    %79 = arith.truncf %78 : vector<16x64xf32> to vector<16x64xbf16>
    %c256 = arith.constant 256 : index
    %c0_40 = arith.constant 0 : index
    %80 = vector.load %arg2[%c256, %c0_40] : memref<352x128xbf16, #tpu.memory_space<vmem>>, vector<64x64xbf16>
    %cst_41 = arith.constant dense<0.000000e+00> : vector<16x64xf32>
    %81 = tpu.matmul %79, %80, %cst_41 {dimension_numbers = #tpu.dot_dimension_numbers<[1], [0], [0], [1], [0, 0, 1, 1], [], []>} : vector<16x64xbf16>, vector<64x64xbf16>, vector<16x64xf32> -> vector<16x64xf32>
    %82 = vector.extract_strided_slice %81 {offsets = [0, 0], sizes = [16, 32], strides = [1, 1]} : vector<16x64xf32> to vector<16x32xf32>
    %83 = arith.truncf %82 : vector<16x32xf32> to vector<16x32xbf16>
    %84 = vector.extract_strided_slice %81 {offsets = [0, 32], sizes = [16, 32], strides = [1, 1]} : vector<16x64xf32> to vector<16x32xf32>
    %cst_42 = arith.constant dense<0.000000e+00> : vector<16x32xf32>
    %85 = tpu.matmul %0, %83, %cst_42 {dimension_numbers = #tpu.dot_dimension_numbers<[1], [0], [0], [1], [0, 0, 1, 1], [], []>} : vector<16x16xbf16>, vector<16x32xbf16>, vector<16x32xf32> -> vector<16x32xf32>
    %86 = arith.addf %85, %84 : vector<16x32xf32>
    %c8 = arith.constant 8 : index
    %c0_43 = arith.constant 0 : index
    %87 = vector.load %arg3[%c8, %c0_43] : memref<16x128xf32, #tpu.memory_space<vmem>>, vector<1x32xf32>
    %88 = vector.broadcast %87 : vector<1x32xf32> to vector<16x32xf32>
    %89 = arith.addf %86, %88 : vector<16x32xf32>
    %cst_44 = arith.constant 0.000000e+00 : f32
    %90 = vector.broadcast %cst_44 : f32 to vector<16x32xf32>
    %91 = arith.maximumf %89, %90 : vector<16x32xf32>
    %cst_45 = arith.constant dense<0.000000e+00> : vector<32xf32>
    %92 = vector.multi_reduction <add>, %91, %cst_45 [0] : vector<16x32xf32> to vector<32xf32>
    %93 = vector.shape_cast %92 : vector<32xf32> to vector<1x32xf32>
    %cst_46 = arith.constant 1.600000e+01 : f32
    %94 = vector.broadcast %cst_46 : f32 to vector<1x32xf32>
    %95 = arith.divf %93, %94 : vector<1x32xf32>
    %96 = arith.truncf %95 : vector<1x32xf32> to vector<1x32xbf16>
    %c320 = arith.constant 320 : index
    %c0_47 = arith.constant 0 : index
    %97 = vector.load %arg2[%c320, %c0_47] : memref<352x128xbf16, #tpu.memory_space<vmem>>, vector<32x4xbf16>
    %cst_48 = arith.constant dense<0.000000e+00> : vector<1x4xf32>
    %98 = tpu.matmul %96, %97, %cst_48 {dimension_numbers = #tpu.dot_dimension_numbers<[1], [0], [0], [1], [0, 0, 1, 1], [], []>} : vector<1x32xbf16>, vector<32x4xbf16>, vector<1x4xf32> -> vector<1x4xf32>
    %c9 = arith.constant 9 : index
    %c0_49 = arith.constant 0 : index
    %99 = vector.load %arg3[%c9, %c0_49] : memref<16x128xf32, #tpu.memory_space<vmem>>, vector<1x4xf32>
    %100 = arith.addf %98, %99 : vector<1x4xf32>
    %101 = arith.negf %100 : vector<1x4xf32>
    %102 = math.exp %101 : vector<1x4xf32>
    %cst_50 = arith.constant 1.000000e+00 : f32
    %103 = vector.broadcast %cst_50 : f32 to vector<1x4xf32>
    %104 = arith.addf %103, %102 : vector<1x4xf32>
    %105 = arith.divf %103, %104 : vector<1x4xf32>
    %c0_51 = arith.constant 0 : index
    %c0_52 = arith.constant 0 : index
    %106 = vector.load %arg4[%c0_51, %c0_52] : memref<1x4xf32, #tpu.memory_space<vmem>>, vector<1x4xf32>
    tpu.vector_store %arg4[%c0_51, %c0_52], %105 {strides = array<i32>} : memref<1x4xf32, #tpu.memory_space<vmem>>, vector<1x4xf32>,
    return
  }
}

</mosaic_0001>

<llo_original>
// kernel: forward.1
$region0: #{forward.1}
  #allocation0 [shape = 'u32[]', space=smem, size = 0x4, offset = 0x4, fixed_abs, tag = 'smem constant byte address 0x4 - core index']
  #allocation1 [shape = 'u32[144,128]{1,0:T(1,128)}', space=vmem, size = 0x12000, scoped, tag = 'internal scratch']
  %s0 = inlined_call_operand.hbm [shape: bf16[16,32], index: 0, kind: input, shape index: {}]
  %s1 = inlined_call_operand.hbm [shape: bf16[16,16], index: 1, kind: input, shape index: {}]
  %s2 = inlined_call_operand.hbm [shape: bf16[352,128], index: 2, kind: input, shape index: {}]
  %s3 = inlined_call_operand.hbm [shape: f32[16,128], index: 3, kind: input, shape index: {}]
  %s4 = inlined_call_operand.hbm [shape: f32[1,4], index: 4, kind: output, shape index: {0}]
  %s5 = inlined_call_operand.vmem [shape: f32[16,48], index: 5, kind: output, shape index: {1}]
  %6 = xla_tuple %s4, %s5
  %s7 = sld [smem:[#allocation0]]
  $region50: #{forward.1} parent=0
    _
  %s9 = ssub.s32 1, %s7
  %s10 = scalar_select 0, %s9, %s7
  $region1: #{forward.1} parent=0
    #allocation2 [shape = 'u8[4096]{0}', space=vmem, size = 0x1000, scoped, tag = 'input window, operand 0, single buffered']
    #allocation3 [shape = 's32[1]{0}', space=sflag, size = 0x4, scoped, tag = 'scoped memory for forward.1']
    #allocation4 [shape = 's32[1]{0}', space=sflag, size = 0x4, scoped, tag = 'scoped memory for forward.1']
    #allocation5 [shape = 'u8[4096]{0}', space=vmem, size = 0x1000, scoped, tag = 'input window, operand 1, single buffered']
    #allocation6 [shape = 's32[1]{0}', space=sflag, size = 0x4, scoped, tag = 'scoped memory for forward.1']
    #allocation7 [shape = 'u8[90112]{0}', space=vmem, size = 0x16000, scoped, tag = 'input window, operand 2, single buffered']
    #allocation8 [shape = 'u8[8192]{0}', space=vmem, size = 0x2000, scoped, tag = 'input window, operand 3, single buffered']
    #allocation9 [shape = 's32[1]{0}', space=sflag, size = 0x4, scoped, tag = 'scoped memory for forward.1']
    #allocation10 [shape = 'u8[512]{0}', space=vmem, size = 0x400, scoped, tag = 'output window, operand 0, single buffered']
    %11 = vsyncpa [#allocation3], 0
    %12 = vsyncpa [#allocation6], 0
    %13 = vsyncpa [#allocation9], 0
    %14 = vsyncpa [#allocation4], 0
    // Predicated region
    $region2: #{forward.1} parent=1 // pred_check
      _
    $region3: #{forward.1} parent=1 // pred_check_branch
      %16 = sbr.rel (0) target = $region5
    $region4: #{forward.1} parent=1 // pred_region
      %s18 = ssub.s32 128, 128
      %19 = vsyncadd [#allocation3], %s18
      %s20 = sshll.u32 [#allocation2], 4
      %s21 = int_to_ptr.vmem [resolvable:$true] %s20
      %26 = dma.hbm_to_vmem [thread:$0]  %s0, 128, %s21, [#allocation3], 64, 64, 4
    $region5: #{forward.1} parent=1 // pred_fallthru
      _
    // Predicated region
    $region6: #{forward.1} parent=1 // pred_check
      _
    $region7: #{forward.1} parent=1 // pred_check_branch
      %28 = sbr.rel (0) target = $region9
    $region8: #{forward.1} parent=1 // pred_region
      %s30 = ssub.s32 128, 128
      %31 = vsyncadd [#allocation6], %s30
      %s32 = sshll.u32 [#allocation5], 4
      %s33 = int_to_ptr.vmem [resolvable:$true] %s32
      %38 = dma.hbm_to_vmem [thread:$0]  %s1, 128, %s33, [#allocation6], 64, 64, 4
    $region9: #{forward.1} parent=1 // pred_fallthru
      _
    // Predicated region
    $region10: #{forward.1} parent=1 // pred_check
      _
    $region11: #{forward.1} parent=1 // pred_check_branch
      %40 = sbr.rel (0) target = $region13
    $region12: #{forward.1} parent=1 // pred_region
      %s42 = ssub.s32 2816, 2816
      %43 = vsyncadd [#allocation6], %s42
      %s44 = sshll.u32 [#allocation7], 4
      %s45 = int_to_ptr.vmem [resolvable:$true] %s44
      %50 = dma.hbm_to_vmem [thread:$0]  %s2, 2816, %s45, [#allocation6], 64, 64, 4
    $region13: #{forward.1} parent=1 // pred_fallthru
      _
    // Predicated region
    $region14: #{forward.1} parent=1 // pred_check
      _
    $region15: #{forward.1} parent=1 // pred_check_branch
      %52 = sbr.rel (0) target = $region17
    $region16: #{forward.1} parent=1 // pred_region
      %s54 = ssub.s32 256, 256
      %55 = vsyncadd [#allocation9], %s54
      %s56 = sshll.u32 [#allocation8], 4
      %s57 = int_to_ptr.vmem [resolvable:$true] %s56
      %62 = dma.hbm_to_vmem [thread:$0]  %s3, 256, %s57, [#allocation9], 128, 128, 8
    $region17: #{forward.1} parent=1 // pred_fallthru
      _
    // Predicated region
    $region18: #{forward.1} parent=1 // pred_check
      _
    $region19: #{forward.1} parent=1 // pred_check_branch
      %64 = sbr.rel (0) target = $region21
    $region20: #{forward.1} parent=1 // pred_region
      %65 = dma.done [#allocation3], 128
    $region21: #{forward.1} parent=1 // pred_fallthru
      _
    // Predicated region
    $region22: #{forward.1} parent=1 // pred_check
      _
    $region23: #{forward.1} parent=1 // pred_check_branch
      %67 = sbr.rel (0) target = $region25
    $region24: #{forward.1} parent=1 // pred_region
      %68 = dma.done [#allocation6], 128
    $region25: #{forward.1} parent=1 // pred_fallthru
      _
    // Predicated region
    $region26: #{forward.1} parent=1 // pred_check
      _
    $region27: #{forward.1} parent=1 // pred_check_branch
      %70 = sbr.rel (0) target = $region29
    $region28: #{forward.1} parent=1 // pred_region
      %71 = dma.done [#allocation6], 2816
    $region29: #{forward.1} parent=1 // pred_fallthru
      _
    // Predicated region
    $region30: #{forward.1} parent=1 // pred_check
      _
    $region31: #{forward.1} parent=1 // pred_check_branch
      %73 = sbr.rel (0) target = $region33
    $region32: #{forward.1} parent=1 // pred_region
      %74 = dma.done [#allocation9], 256
    $region33: #{forward.1} parent=1 // pred_fallthru
      _
    %v76 = vld [vmem:[#allocation5] sm:$0xf]
    %v77 = vld [vmem:[#allocation5 + $0x4] sm:$0xf]
    %v78 = vld [vmem:[#allocation2] sm:$0xf]
    %v79 = vld [vmem:[#allocation2 + $0x4] sm:$0xf]
    %v80 = vld [vmem:[#allocation7] sm:$0xf]
    %v81 = vld [vmem:[#allocation7 + $0x4] sm:$0xf]
    %v82 = vld [vmem:[#allocation7 + $0x8] sm:$0xf]
    %v83 = vld [vmem:[#allocation7 + $0xc] sm:$0xf]
    %v84 = vld [vmem:[#allocation8] sm:$0x1]
    %v85 = vlaneseq
    %v86 = vshrl.u32 %v85, 7
    %v87 = vsub.s32 0, %v86
    %v88 = vrot.slane %v84, %v87
    %v91 = vunpack.c.l.b16 %v78
    %v92 = vunpack.c.l.b16 %v79
    %v93 = vpack.c.b16 %v92, %v91
    %v98 = vunpack.c.l.b16 %v80
    %v99 = vunpack.c.l.b16 %v81
    %v100 = vunpack.c.l.b16 %v82
    %v101 = vunpack.c.l.b16 %v83
    %v102 = vpack.c.b16 %v99, %v98
    %v103 = vpack.c.b16 %v101, %v100
    %vm106 = vcmask 261120
    %v108 = vsel %vm106, %v93, 0
    %110 = vmatprep.subr.bf16.mxu0 0
    %111 = vmatpush1.bf16.msra.mxu0 0
    %112 = vmatprep.subr.bf16.mxu0 0
    %113 = vmatpush1.bf16.msra.mxu0 0
    %114 = vmatprep.subr.bf16.mxu0 0
    %115 = vmatpush1.bf16.msra.mxu0 0
    %116 = vmatprep.subr.bf16.mxu0 0
    %117 = vmatpush1.bf16.msra.mxu0 0
    %118 = vmatprep.subr.bf16.mxu0 0
    %119 = vmatpush1.bf16.msra.mxu0 0
    %120 = vmatprep.subr.bf16.mxu0 0
    %121 = vmatpush1.bf16.msra.mxu0 0
    %122 = vmatprep.subr.bf16.mxu0 0
    %123 = vmatpush1.bf16.msra.mxu0 %v103
    %124 = vmatprep.subr.bf16.mxu0 0
    %125 = vmatpush1.bf16.msra.mxu0 %v102
    %126 = vmatprep.subr.bf16.mxu0 0
    %127 = vmatpush2.bf16.msra.mxu0 0
    %128 = vmatprep.subr.bf16.mxu0 0
    %129 = vmatpush2.bf16.msra.mxu0 0
    %130 = vmatprep.subr.bf16.mxu0 0
    %131 = vmatpush2.bf16.msra.mxu0 0
    %132 = vmatprep.subr.bf16.mxu0 0
    %133 = vmatpush2.bf16.msra.mxu0 0
    %134 = vmatprep.subr.bf16.mxu0 0
    %135 = vmatpush2.bf16.msra.mxu0 0
    %136 = vmatprep.subr.bf16.mxu0 0
    %137 = vmatpush2.bf16.msra.mxu0 0
    %138 = vmatprep.subr.bf16.mxu0 0
    %139 = vmatpush2.bf16.msra.mxu0 0
    %140 = vmatprep.subr.bf16.mxu0 0
    %141 = vmatpush2.bf16.msra.mxu0 0
    %142 = vmatprep.mubr.bf16.mxu0 0
    %143 = vmatmul.mubr.bf16.gmra.mxu0 %v108
    %v144 = vpop.f32.mrf.mxu0
    %v145 = vadd.f32 %v88, %v144
    %v146 = vpop.f32.mrf.mxu0
    %v147 = vpop.f32.mrf.mxu0
    %v148 = vadd.f32 %v88, %v147
    %v149 = vpop.f32.mrf.mxu0
    %150 = vdwg.mxu0
    %v151 = vmax.f32 %v145, 0.0
    %v152 = vmax.f32 %v148, 0.0
    %v153 = vpack.c.bf16 %v152, %v151
    %v154 = vld [vmem:[#allocation7 + $0x10] sm:$0xf]
    %v155 = vld [vmem:[#allocation7 + $0x14] sm:$0xf]
    %v156 = vld [vmem:[#allocation7 + $0x18] sm:$0xf]
    %v157 = vld [vmem:[#allocation7 + $0x1c] sm:$0xf]
    %v158 = vld [vmem:[#allocation8 + $0x1] sm:$0x1]
    %v159 = vlaneseq
    %v160 = vshrl.u32 %v159, 7
    %v161 = vsub.s32 0, %v160
    %v162 = vrot.slane %v158, %v161
    %v167 = vunpack.c.l.b16 %v154
    %v168 = vunpack.c.l.b16 %v155
    %v169 = vunpack.c.l.b16 %v156
    %v170 = vunpack.c.l.b16 %v157
    %v171 = vpack.c.b16 %v168, %v167
    %v172 = vpack.c.b16 %v170, %v169
    %v176 = vsel %vm106, %v153, 0
    %178 = vmatprep.subr.bf16.mxu0 0
    %179 = vmatpush1.bf16.msra.mxu0 0
    %180 = vmatprep.subr.bf16.mxu0 0
    %181 = vmatpush1.bf16.msra.mxu0 0
    %182 = vmatprep.subr.bf16.mxu0 0
    %183 = vmatpush1.bf16.msra.mxu0 0
    %184 = vmatprep.subr.bf16.mxu0 0
    %185 = vmatpush1.bf16.msra.mxu0 0
    %186 = vmatprep.subr.bf16.mxu0 0
    %187 = vmatpush1.bf16.msra.mxu0 0
    %188 = vmatprep.subr.bf16.mxu0 0
    %189 = vmatpush1.bf16.msra.mxu0 0
    %190 = vmatprep.subr.bf16.mxu0 0
    %191 = vmatpush1.bf16.msra.mxu0 %v172
    %192 = vmatprep.subr.bf16.mxu0 0
    %193 = vmatpush1.bf16.msra.mxu0 %v171
    %194 = vmatprep.subr.bf16.mxu0 0
    %195 = vmatpush2.bf16.msra.mxu0 0
    %196 = vmatprep.subr.bf16.mxu0 0
    %197 = vmatpush2.bf16.msra.mxu0 0
    %198 = vmatprep.subr.bf16.mxu0 0
    %199 = vmatpush2.bf16.msra.mxu0 0
    %200 = vmatprep.subr.bf16.mxu0 0
    %201 = vmatpush2.bf16.msra.mxu0 0
    %202 = vmatprep.subr.bf16.mxu0 0
    %203 = vmatpush2.bf16.msra.mxu0 0
    %204 = vmatprep.subr.bf16.mxu0 0
    %205 = vmatpush2.bf16.msra.mxu0 0
    %206 = vmatprep.subr.bf16.mxu0 0
    %207 = vmatpush2.bf16.msra.mxu0 0
    %208 = vmatprep.subr.bf16.mxu0 0
    %209 = vmatpush2.bf16.msra.mxu0 0
    %210 = vmatprep.mubr.bf16.mxu0 0
    %211 = vmatmul.mubr.bf16.gmra.mxu0 %v176
    %v212 = vpop.f32.mrf.mxu0
    %v213 = vadd.f32 %v162, %v212
    %v214 = vpop.f32.mrf.mxu0
    %v215 = vpop.f32.mrf.mxu0
    %v216 = vadd.f32 %v162, %v215
    %v217 = vpop.f32.mrf.mxu0
    %218 = vdwg.mxu0
    %v219 = vmax.f32 %v213, 0.0
    %v220 = vmax.f32 %v216, 0.0
    %v221 = vpack.c.bf16 %v220, %v219
    %v222 = vld [vmem:[#allocation7 + $0x20] sm:$0xf]
    %v223 = vld [vmem:[#allocation7 + $0x24] sm:$0xf]
    %v224 = vld [vmem:[#allocation7 + $0x28] sm:$0xf]
    %v225 = vld [vmem:[#allocation7 + $0x2c] sm:$0xf]
    %v226 = vld [vmem:[#allocation8 + $0x2] sm:$0x1]
    %v227 = vlaneseq
    %v228 = vshrl.u32 %v227, 7
    %v229 = vsub.s32 0, %v228
    %v230 = vrot.slane %v226, %v229
    %v235 = vunpack.c.l.b16 %v222
    %v236 = vunpack.c.l.b16 %v223
    %v237 = vunpack.c.l.b16 %v224
    %v238 = vunpack.c.l.b16 %v225
    %v239 = vpack.c.b16 %v236, %v235
    %v240 = vpack.c.b16 %v238, %v237
    %v244 = vsel %vm106, %v221, 0
    %246 = vmatprep.subr.bf16.mxu0 0
    %247 = vmatpush1.bf16.msra.mxu0 0
    %248 = vmatprep.subr.bf16.mxu0 0
    %249 = vmatpush1.bf16.msra.mxu0 0
    %250 = vmatprep.subr.bf16.mxu0 0
    %251 = vmatpush1.bf16.msra.mxu0 0
    %252 = vmatprep.subr.bf16.mxu0 0
    %253 = vmatpush1.bf16.msra.mxu0 0
    %254 = vmatprep.subr.bf16.mxu0 0
    %255 = vmatpush1.bf16.msra.mxu0 0
    %256 = vmatprep.subr.bf16.mxu0 0
    %257 = vmatpush1.bf16.msra.mxu0 0
    %258 = vmatprep.subr.bf16.mxu0 0
    %259 = vmatpush1.bf16.msra.mxu0 %v240
    %260 = vmatprep.subr.bf16.mxu0 0
    %261 = vmatpush1.bf16.msra.mxu0 %v239
    %262 = vmatprep.subr.bf16.mxu0 0
    %263 = vmatpush2.bf16.msra.mxu0 0
    %264 = vmatprep.subr.bf16.mxu0 0
    %265 = vmatpush2.bf16.msra.mxu0 0
    %266 = vmatprep.subr.bf16.mxu0 0
    %267 = vmatpush2.bf16.msra.mxu0 0
    %268 = vmatprep.subr.bf16.mxu0 0
    %269 = vmatpush2.bf16.msra.mxu0 0
    %270 = vmatprep.subr.bf16.mxu0 0
    %271 = vmatpush2.bf16.msra.mxu0 0
    %272 = vmatprep.subr.bf16.mxu0 0
    %273 = vmatpush2.bf16.msra.mxu0 0
    %274 = vmatprep.subr.bf16.mxu0 0
    %275 = vmatpush2.bf16.msra.mxu0 0
    %276 = vmatprep.subr.bf16.mxu0 0
    %277 = vmatpush2.bf16.msra.mxu0 0
    %278 = vmatprep.mubr.bf16.mxu0 0
    %279 = vmatmul.mubr.bf16.gmra.mxu0 %v244
    %v280 = vpop.f32.mrf.mxu0
    %v281 = vadd.f32 %v230, %v280
    %v282 = vpop.f32.mrf.mxu0
    %v283 = vpop.f32.mrf.mxu0
    %v284 = vadd.f32 %v230, %v283
    %v285 = vpop.f32.mrf.mxu0
    %286 = vdwg.mxu0
    %v287 = vmax.f32 %v281, 0.0
    %v288 = vmax.f32 %v284, 0.0
    %v289 = vpack.c.bf16 %v288, %v287
    %v290 = vld [vmem:[#allocation7 + $0x30] sm:$0xf]
    %v291 = vld [vmem:[#allocation7 + $0x34] sm:$0xf]
    %v292 = vld [vmem:[#allocation8 + $0x3] sm:$0x1]
    %v293 = vlaneseq
    %v294 = vshrl.u32 %v293, 7
    %v295 = vsub.s32 0, %v294
    %v296 = vrot.slane %v292, %v295
    %v299 = vunpack.c.l.b16 %v290
    %v300 = vunpack.c.l.b16 %v291
    %v301 = vpack.c.b16 %v300, %v299
    %vm303 = vcmask 130048
    %v305 = vsel %vm303, %v289, 0
    %307 = vmatprep.subr.bf16.mxu0 0
    %308 = vmatpush1.bf16.msra.mxu0 0
    %309 = vmatprep.subr.bf16.mxu0 0
    %310 = vmatpush1.bf16.msra.mxu0 0
    %311 = vmatprep.subr.bf16.mxu0 0
    %312 = vmatpush1.bf16.msra.mxu0 0
    %313 = vmatprep.subr.bf16.mxu0 0
    %314 = vmatpush1.bf16.msra.mxu0 0
    %315 = vmatprep.subr.bf16.mxu0 0
    %316 = vmatpush1.bf16.msra.mxu0 0
    %317 = vmatprep.subr.bf16.mxu0 0
    %318 = vmatpush1.bf16.msra.mxu0 0
    %319 = vmatprep.subr.bf16.mxu0 0
    %320 = vmatpush1.bf16.msra.mxu0 0
    %321 = vmatprep.subr.bf16.mxu0 0
    %322 = vmatpush1.bf16.msra.mxu0 %v301
    %323 = vmatprep.subr.bf16.mxu0 0
    %324 = vmatpush2.bf16.msra.mxu0 0
    %325 = vmatprep.subr.bf16.mxu0 0
    %326 = vmatpush2.bf16.msra.mxu0 0
    %327 = vmatprep.subr.bf16.mxu0 0
    %328 = vmatpush2.bf16.msra.mxu0 0
    %329 = vmatprep.subr.bf16.mxu0 0
    %330 = vmatpush2.bf16.msra.mxu0 0
    %331 = vmatprep.subr.bf16.mxu0 0
    %332 = vmatpush2.bf16.msra.mxu0 0
    %333 = vmatprep.subr.bf16.mxu0 0
    %334 = vmatpush2.bf16.msra.mxu0 0
    %335 = vmatprep.subr.bf16.mxu0 0
    %336 = vmatpush2.bf16.msra.mxu0 0
    %337 = vmatprep.subr.bf16.mxu0 0
    %338 = vmatpush2.bf16.msra.mxu0 0
    %339 = vmatprep.mubr.bf16.mxu0 0
    %340 = vmatmul.mubr.bf16.gmra.mxu0 %v305
    %v341 = vpop.f32.mrf.mxu0
    %v342 = vadd.f32 %v296, %v341
    %v343 = vpop.f32.mrf.mxu0
    %v344 = vpop.f32.mrf.mxu0
    %v345 = vadd.f32 %v296, %v344
    %v346 = vpop.f32.mrf.mxu0
    %347 = vdwg.mxu0
    %v348 = vmax.f32 %v342, 0.0
    %v349 = vmax.f32 %v345, 0.0
    %v350 = vpack.c.bf16 %v349, %v348
    %v351 = vld [vmem:[#allocation7 + $0x38] sm:$0xf]
    %v352 = vld [vmem:[#allocation7 + $0x3c] sm:$0xf]
    %v353 = vld [vmem:[#allocation7 + $0x40] sm:$0xf]
    %v354 = vld [vmem:[#allocation7 + $0x44] sm:$0xf]
    %v355 = vld [vmem:[#allocation8 + $0x4] sm:$0x1]
    %v356 = vlaneseq
    %v357 = vshrl.u32 %v356, 7
    %v358 = vsub.s32 0, %v357
    %v359 = vrot.slane %v355, %v358
    %v364 = vunpack.c.l.b16 %v351
    %v365 = vunpack.c.l.b16 %v352
    %v366 = vunpack.c.l.b16 %v353
    %v367 = vunpack.c.l.b16 %v354
    %v368 = vpack.c.b16 %v365, %v364
    %v369 = vpack.c.b16 %v367, %v366
    %v373 = vsel %vm106, %v350, 0
    %375 = vmatprep.subr.bf16.mxu0 0
    %376 = vmatpush1.bf16.msra.mxu0 0
    %377 = vmatprep.subr.bf16.mxu0 0
    %378 = vmatpush1.bf16.msra.mxu0 0
    %379 = vmatprep.subr.bf16.mxu0 0
    %380 = vmatpush1.bf16.msra.mxu0 0
    %381 = vmatprep.subr.bf16.mxu0 0
    %382 = vmatpush1.bf16.msra.mxu0 0
    %383 = vmatprep.subr.bf16.mxu0 0
    %384 = vmatpush1.bf16.msra.mxu0 0
    %385 = vmatprep.subr.bf16.mxu0 0
    %386 = vmatpush1.bf16.msra.mxu0 0
    %387 = vmatprep.subr.bf16.mxu0 0
    %388 = vmatpush1.bf16.msra.mxu0 %v369
    %389 = vmatprep.subr.bf16.mxu0 0
    %390 = vmatpush1.bf16.msra.mxu0 %v368
    %391 = vmatprep.subr.bf16.mxu0 0
    %392 = vmatpush2.bf16.msra.mxu0 0
    %393 = vmatprep.subr.bf16.mxu0 0
    %394 = vmatpush2.bf16.msra.mxu0 0
    %395 = vmatprep.subr.bf16.mxu0 0
    %396 = vmatpush2.bf16.msra.mxu0 0
    %397 = vmatprep.subr.bf16.mxu0 0
    %398 = vmatpush2.bf16.msra.mxu0 0
    %399 = vmatprep.subr.bf16.mxu0 0
    %400 = vmatpush2.bf16.msra.mxu0 0
    %401 = vmatprep.subr.bf16.mxu0 0
    %402 = vmatpush2.bf16.msra.mxu0 0
    %403 = vmatprep.subr.bf16.mxu0 0
    %404 = vmatpush2.bf16.msra.mxu0 0
    %405 = vmatprep.subr.bf16.mxu0 0
    %406 = vmatpush2.bf16.msra.mxu0 0
    %407 = vmatprep.mubr.bf16.mxu0 0
    %408 = vmatmul.mubr.bf16.gmra.mxu0 %v373
    %v409 = vpop.f32.mrf.mxu0
    %v410 = vadd.f32 %v359, %v409
    %v411 = vpop.f32.mrf.mxu0
    %v412 = vpop.f32.mrf.mxu0
    %v413 = vadd.f32 %v359, %v412
    %v414 = vpop.f32.mrf.mxu0
    %415 = vdwg.mxu0
    %v416 = vmax.f32 %v410, 0.0
    %v417 = vmax.f32 %v413, 0.0
    %v418 = vpack.c.bf16 %v417, %v416
    %v419 = vld [vmem:[#allocation7 + $0x48] sm:$0xf]
    %v420 = vld [vmem:[#allocation7 + $0x4c] sm:$0xf]
    %v421 = vld [vmem:[#allocation7 + $0x50] sm:$0xf]
    %v422 = vld [vmem:[#allocation7 + $0x54] sm:$0xf]
    %v423 = vld [vmem:[#allocation8 + $0x5] sm:$0x1]
    %v424 = vlaneseq
    %v425 = vshrl.u32 %v424, 7
    %v426 = vsub.s32 0, %v425
    %v427 = vrot.slane %v423, %v426
    %v432 = vunpack.c.l.b16 %v419
    %v433 = vunpack.c.l.b16 %v420
    %v434 = vunpack.c.l.b16 %v421
    %v435 = vunpack.c.l.b16 %v422
    %v436 = vpack.c.b16 %v433, %v432
    %v437 = vpack.c.b16 %v435, %v434
    %v441 = vsel %vm106, %v418, 0
    %443 = vmatprep.subr.bf16.mxu0 0
    %444 = vmatpush1.bf16.msra.mxu0 0
    %445 = vmatprep.subr.bf16.mxu0 0
    %446 = vmatpush1.bf16.msra.mxu0 0
    %447 = vmatprep.subr.bf16.mxu0 0
    %448 = vmatpush1.bf16.msra.mxu0 0
    %449 = vmatprep.subr.bf16.mxu0 0
    %450 = vmatpush1.bf16.msra.mxu0 0
    %451 = vmatprep.subr.bf16.mxu0 0
    %452 = vmatpush1.bf16.msra.mxu0 0
    %453 = vmatprep.subr.bf16.mxu0 0
    %454 = vmatpush1.bf16.msra.mxu0 0
    %455 = vmatprep.subr.bf16.mxu0 0
    %456 = vmatpush1.bf16.msra.mxu0 %v437
    %457 = vmatprep.subr.bf16.mxu0 0
    %458 = vmatpush1.bf16.msra.mxu0 %v436
    %459 = vmatprep.subr.bf16.mxu0 0
    %460 = vmatpush2.bf16.msra.mxu0 0
    %461 = vmatprep.subr.bf16.mxu0 0
    %462 = vmatpush2.bf16.msra.mxu0 0
    %463 = vmatprep.subr.bf16.mxu0 0
    %464 = vmatpush2.bf16.msra.mxu0 0
    %465 = vmatprep.subr.bf16.mxu0 0
    %466 = vmatpush2.bf16.msra.mxu0 0
    %467 = vmatprep.subr.bf16.mxu0 0
    %468 = vmatpush2.bf16.msra.mxu0 0
    %469 = vmatprep.subr.bf16.mxu0 0
    %470 = vmatpush2.bf16.msra.mxu0 0
    %471 = vmatprep.subr.bf16.mxu0 0
    %472 = vmatpush2.bf16.msra.mxu0 0
    %473 = vmatprep.subr.bf16.mxu0 0
    %474 = vmatpush2.bf16.msra.mxu0 0
    %475 = vmatprep.mubr.bf16.mxu0 0
    %476 = vmatmul.mubr.bf16.gmra.mxu0 %v441
    %v477 = vpop.f32.mrf.mxu0
    %v478 = vadd.f32 %v427, %v477
    %v479 = vpop.f32.mrf.mxu0
    %v480 = vpop.f32.mrf.mxu0
    %v481 = vadd.f32 %v427, %v480
    %v482 = vpop.f32.mrf.mxu0
    %483 = vdwg.mxu0
    %v484 = vxor.u32 %v478, 2147483648
    %v485 = vxor.u32 %v481, 2147483648
    %v486 = vmul.f32 %v484, 1.442695
    %v487 = vpow.pop %v486
    %v488 = vmul.f32 %v485, 1.442695
    %v489 = vpow.pop %v488
    %v490 = vadd.f32 %v487, 1.0
    %v491 = vadd.f32 %v489, 1.0
    %v492 = vrcp.pop %v490
    %v493 = vmul.f32 1.0, %v492
    %v494 = vrcp.pop %v491
    %v495 = vmul.f32 1.0, %v494
    %498 = vrot.lane.b32.xlu0 %v493, 16
    %v499 = vpop.permute.xlu0 %498
    %500 = vrot.lane.b32.xlu0 %v495, 16
    %v501 = vpop.permute.xlu0 %500
    %v504 = vsel %vm303, %v287, %v499
    %v505 = vsel %vm303, %v288, %v501
    %vm506 = vcmask 392192
    %507 = vst.msk [vmem:[%s5] sm:$0xff] %vm506, %v504
    %508 = vst.msk [vmem:[%s5 + $0x8] sm:$0xff] %vm506, %v505
    %v509 = vld [vmem:[#allocation7 + $0x58] sm:$0xf]
    %v510 = vld [vmem:[#allocation7 + $0x5c] sm:$0xf]
    %v513 = vunpack.c.l.b16 %v509
    %v514 = vunpack.c.l.b16 %v510
    %v515 = vpack.c.b16 %v514, %v513
    %517 = vmatprep.subr.bf16.mxu0 0
    %518 = vmatpush1.bf16.msra.mxu0 0
    %519 = vmatprep.subr.bf16.mxu0 0
    %520 = vmatpush1.bf16.msra.mxu0 0
    %521 = vmatprep.subr.bf16.mxu0 0
    %522 = vmatpush1.bf16.msra.mxu0 0
    %523 = vmatprep.subr.bf16.mxu0 0
    %524 = vmatpush1.bf16.msra.mxu0 0
    %525 = vmatprep.subr.bf16.mxu0 0
    %526 = vmatpush1.bf16.msra.mxu0 0
    %527 = vmatprep.subr.bf16.mxu0 0
    %528 = vmatpush1.bf16.msra.mxu0 0
    %529 = vmatprep.subr.bf16.mxu0 0
    %530 = vmatpush1.bf16.msra.mxu0 0
    %531 = vmatprep.subr.bf16.mxu0 0
    %532 = vmatpush1.bf16.msra.mxu0 %v515
    %533 = vmatprep.subr.bf16.mxu0 0
    %534 = vmatpush2.bf16.msra.mxu0 0
    %535 = vmatprep.subr.bf16.mxu0 0
    %536 = vmatpush2.bf16.msra.mxu0 0
    %537 = vmatprep.subr.bf16.mxu0 0
    %538 = vmatpush2.bf16.msra.mxu0 0
    %539 = vmatprep.subr.bf16.mxu0 0
    %540 = vmatpush2.bf16.msra.mxu0 0
    %541 = vmatprep.subr.bf16.mxu0 0
    %542 = vmatpush2.bf16.msra.mxu0 0
    %543 = vmatprep.subr.bf16.mxu0 0
    %544 = vmatpush2.bf16.msra.mxu0 0
    %545 = vmatprep.subr.bf16.mxu0 0
    %546 = vmatpush2.bf16.msra.mxu0 0
    %547 = vmatprep.subr.bf16.mxu0 0
    %548 = vmatpush2.bf16.msra.mxu0 0
    %549 = vmatprep.mubr.bf16.mxu0 0
    %550 = vmatmul.mubr.bf16.gmra.mxu0 %v305
    %v551 = vpop.f32.mrf.mxu0
    %v552 = vadd.f32 0.0, %v551
    %v553 = vpop.f32.mrf.mxu0
    %v554 = vpop.f32.mrf.mxu0
    %v555 = vadd.f32 0.0, %v554
    %v556 = vpop.f32.mrf.mxu0
    %557 = vdwg.mxu0
    %v558 = vpack.c.bf16 %v555, %v552
    %v561 = vunpack.c.l.b16 %v76
    %v562 = vunpack.c.l.b16 %v77
    %v563 = vpack.c.b16 %v562, %v561
    %566 = vrot.lane.b32.xlu0 %v552, 64
    %v567 = vpop.permute.xlu0 %566
    %568 = vrot.lane.b32.xlu0 %v555, 64
    %v569 = vpop.permute.xlu0 %568
    %v573 = vsel %vm303, %v563, 0
    %575 = vmatprep.subr.bf16.mxu0 0
    %576 = vmatpush1.bf16.msra.mxu0 0
    %577 = vmatprep.subr.bf16.mxu0 0
    %578 = vmatpush1.bf16.msra.mxu0 0
    %579 = vmatprep.subr.bf16.mxu0 0
    %580 = vmatpush1.bf16.msra.mxu0 0
    %581 = vmatprep.subr.bf16.mxu0 0
    %582 = vmatpush1.bf16.msra.mxu0 0
    %583 = vmatprep.subr.bf16.mxu0 0
    %584 = vmatpush1.bf16.msra.mxu0 0
    %585 = vmatprep.subr.bf16.mxu0 0
    %586 = vmatpush1.bf16.msra.mxu0 0
    %587 = vmatprep.subr.bf16.mxu0 0
    %588 = vmatpush1.bf16.msra.mxu0 0
    %589 = vmatprep.subr.bf16.mxu0 0
    %590 = vmatpush1.bf16.msra.mxu0 %v558
    %591 = vmatprep.subr.bf16.mxu0 0
    %592 = vmatpush2.bf16.msra.mxu0 0
    %593 = vmatprep.subr.bf16.mxu0 0
    %594 = vmatpush2.bf16.msra.mxu0 0
    %595 = vmatprep.subr.bf16.mxu0 0
    %596 = vmatpush2.bf16.msra.mxu0 0
    %597 = vmatprep.subr.bf16.mxu0 0
    %598 = vmatpush2.bf16.msra.mxu0 0
    %599 = vmatprep.subr.bf16.mxu0 0
    %600 = vmatpush2.bf16.msra.mxu0 0
    %601 = vmatprep.subr.bf16.mxu0 0
    %602 = vmatpush2.bf16.msra.mxu0 0
    %603 = vmatprep.subr.bf16.mxu0 0
    %604 = vmatpush2.bf16.msra.mxu0 0
    %605 = vmatprep.subr.bf16.mxu0 0
    %606 = vmatpush2.bf16.msra.mxu0 0
    %607 = vmatprep.mubr.bf16.mxu0 0
    %608 = vmatmul.mubr.bf16.gmra.mxu0 %v573
    %v609 = vpop.f32.mrf.mxu0
    %v610 = vadd.f32 %v567, %v609
    %v611 = vpop.f32.mrf.mxu0
    %v612 = vpop.f32.mrf.mxu0
    %v613 = vadd.f32 %v569, %v612
    %v614 = vpop.f32.mrf.mxu0
    %615 = vdwg.mxu0
    %v616 = vld [vmem:[#allocation8 + $0x6] sm:$0x1]
    %v617 = vlaneseq
    %v618 = vshrl.u32 %v617, 7
    %v619 = vsub.s32 0, %v618
    %v620 = vrot.slane %v616, %v619
    %v621 = vadd.f32 %v610, %v620
    %v622 = vadd.f32 %v613, %v620
    %v623 = vmax.f32 %v621, 0.0
    %v624 = vmax.f32 %v622, 0.0
    %v625 = vpack.c.bf16 %v624, %v623
    %v626 = vld [vmem:[#allocation7 + $0x60] sm:$0xf]
    %v627 = vld [vmem:[#allocation7 + $0x64] sm:$0xf]
    %v628 = vld [vmem:[#allocation7 + $0x68] sm:$0xf]
    %v629 = vld [vmem:[#allocation7 + $0x6c] sm:$0xf]
    %v630 = vld [vmem:[#allocation7 + $0x70] sm:$0xf]
    %v631 = vld [vmem:[#allocation7 + $0x74] sm:$0xf]
    %v632 = vld [vmem:[#allocation7 + $0x78] sm:$0xf]
    %v633 = vld [vmem:[#allocation7 + $0x7c] sm:$0xf]
    %v642 = vunpack.c.l.b16 %v626
    %v643 = vunpack.c.l.b16 %v627
    %v644 = vunpack.c.l.b16 %v628
    %v645 = vunpack.c.l.b16 %v629
    %v646 = vunpack.c.l.b16 %v630
    %v647 = vunpack.c.l.b16 %v631
    %v648 = vunpack.c.l.b16 %v632
    %v649 = vunpack.c.l.b16 %v633
    %v650 = vpack.c.b16 %v643, %v642
    %v651 = vpack.c.b16 %v645, %v644
    %v652 = vpack.c.b16 %v647, %v646
    %v653 = vpack.c.b16 %v649, %v648
    %vm658 = vcmask 523264
    %v660 = vsel %vm658, %v625, 0
    %662 = vmatprep.subr.bf16.mxu0 0
    %663 = vmatpush1.bf16.msra.mxu0 0
    %664 = vmatprep.subr.bf16.mxu0 0
    %665 = vmatpush1.bf16.msra.mxu0 0
    %666 = vmatprep.subr.bf16.mxu0 0
    %667 = vmatpush1.bf16.msra.mxu0 0
    %668 = vmatprep.subr.bf16.mxu0 0
    %669 = vmatpush1.bf16.msra.mxu0 0
    %670 = vmatprep.subr.bf16.mxu0 0
    %671 = vmatpush1.bf16.msra.mxu0 %v653
    %672 = vmatprep.subr.bf16.mxu0 0
    %673 = vmatpush1.bf16.msra.mxu0 %v652
    %674 = vmatprep.subr.bf16.mxu0 0
    %675 = vmatpush1.bf16.msra.mxu0 %v651
    %676 = vmatprep.subr.bf16.mxu0 0
    %677 = vmatpush1.bf16.msra.mxu0 %v650
    %678 = vmatprep.subr.bf16.mxu0 0
    %679 = vmatpush2.bf16.msra.mxu0 0
    %680 = vmatprep.subr.bf16.mxu0 0
    %681 = vmatpush2.bf16.msra.mxu0 0
    %682 = vmatprep.subr.bf16.mxu0 0
    %683 = vmatpush2.bf16.msra.mxu0 0
    %684 = vmatprep.subr.bf16.mxu0 0
    %685 = vmatpush2.bf16.msra.mxu0 0
    %686 = vmatprep.subr.bf16.mxu0 0
    %687 = vmatpush2.bf16.msra.mxu0 0
    %688 = vmatprep.subr.bf16.mxu0 0
    %689 = vmatpush2.bf16.msra.mxu0 0
    %690 = vmatprep.subr.bf16.mxu0 0
    %691 = vmatpush2.bf16.msra.mxu0 0
    %692 = vmatprep.subr.bf16.mxu0 0
    %693 = vmatpush2.bf16.msra.mxu0 0
    %694 = vmatprep.mubr.bf16.mxu0 0
    %695 = vmatmul.mubr.bf16.gmra.mxu0 %v660
    %v696 = vpop.f32.mrf.mxu0
    %v697 = vadd.f32 0.0, %v696
    %v698 = vpop.f32.mrf.mxu0
    %v699 = vpop.f32.mrf.mxu0
    %v700 = vadd.f32 0.0, %v699
    %v701 = vpop.f32.mrf.mxu0
    %702 = vdwg.mxu0
    %v703 = vpack.c.bf16 %v700, %v697
    %706 = vrot.lane.b32.xlu0 %v697, 64
    %v707 = vpop.permute.xlu0 %706
    %708 = vrot.lane.b32.xlu0 %v700, 64
    %v709 = vpop.permute.xlu0 %708
    %712 = vmatprep.subr.bf16.mxu0 0
    %713 = vmatpush1.bf16.msra.mxu0 0
    %714 = vmatprep.subr.bf16.mxu0 0
    %715 = vmatpush1.bf16.msra.mxu0 0
    %716 = vmatprep.subr.bf16.mxu0 0
    %717 = vmatpush1.bf16.msra.mxu0 0
    %718 = vmatprep.subr.bf16.mxu0 0
    %719 = vmatpush1.bf16.msra.mxu0 0
    %720 = vmatprep.subr.bf16.mxu0 0
    %721 = vmatpush1.bf16.msra.mxu0 0
    %722 = vmatprep.subr.bf16.mxu0 0
    %723 = vmatpush1.bf16.msra.mxu0 0
    %724 = vmatprep.subr.bf16.mxu0 0
    %725 = vmatpush1.bf16.msra.mxu0 0
    %726 = vmatprep.subr.bf16.mxu0 0
    %727 = vmatpush1.bf16.msra.mxu0 %v703
    %728 = vmatprep.subr.bf16.mxu0 0
    %729 = vmatpush2.bf16.msra.mxu0 0
    %730 = vmatprep.subr.bf16.mxu0 0
    %731 = vmatpush2.bf16.msra.mxu0 0
    %732 = vmatprep.subr.bf16.mxu0 0
    %733 = vmatpush2.bf16.msra.mxu0 0
    %734 = vmatprep.subr.bf16.mxu0 0
    %735 = vmatpush2.bf16.msra.mxu0 0
    %736 = vmatprep.subr.bf16.mxu0 0
    %737 = vmatpush2.bf16.msra.mxu0 0
    %738 = vmatprep.subr.bf16.mxu0 0
    %739 = vmatpush2.bf16.msra.mxu0 0
    %740 = vmatprep.subr.bf16.mxu0 0
    %741 = vmatpush2.bf16.msra.mxu0 0
    %742 = vmatprep.subr.bf16.mxu0 0
    %743 = vmatpush2.bf16.msra.mxu0 0
    %744 = vmatprep.mubr.bf16.mxu0 0
    %745 = vmatmul.mubr.bf16.gmra.mxu0 %v573
    %v746 = vpop.f32.mrf.mxu0
    %v747 = vadd.f32 %v707, %v746
    %v748 = vpop.f32.mrf.mxu0
    %v749 = vpop.f32.mrf.mxu0
    %v750 = vadd.f32 %v709, %v749
    %v751 = vpop.f32.mrf.mxu0
    %752 = vdwg.mxu0
    %v753 = vld [vmem:[#allocation8 + $0x7] sm:$0x1]
    %v754 = vlaneseq
    %v755 = vshrl.u32 %v754, 7
    %v756 = vsub.s32 0, %v755
    %v757 = vrot.slane %v753, %v756
    %v758 = vadd.f32 %v747, %v757
    %v759 = vadd.f32 %v750, %v757
    %v760 = vmax.f32 %v758, 0.0
    %v761 = vmax.f32 %v759, 0.0
    %v762 = vpack.c.bf16 %v761, %v760
    %v763 = vld [vmem:[#allocation7 + $0x80] sm:$0xf]
    %v764 = vld [vmem:[#allocation7 + $0x84] sm:$0xf]
    %v765 = vld [vmem:[#allocation7 + $0x88] sm:$0xf]
    %v766 = vld [vmem:[#allocation7 + $0x8c] sm:$0xf]
    %v767 = vld [vmem:[#allocation7 + $0x90] sm:$0xf]
    %v768 = vld [vmem:[#allocation7 + $0x94] sm:$0xf]
    %v769 = vld [vmem:[#allocation7 + $0x98] sm:$0xf]
    %v770 = vld [vmem:[#allocation7 + $0x9c] sm:$0xf]
    %v779 = vunpack.c.l.b16 %v763
    %v780 = vunpack.c.l.b16 %v764
    %v781 = vunpack.c.l.b16 %v765
    %v782 = vunpack.c.l.b16 %v766
    %v783 = vunpack.c.l.b16 %v767
    %v784 = vunpack.c.l.b16 %v768
    %v785 = vunpack.c.l.b16 %v769
    %v786 = vunpack.c.l.b16 %v770
    %v787 = vpack.c.b16 %v780, %v779
    %v788 = vpack.c.b16 %v782, %v781
    %v789 = vpack.c.b16 %v784, %v783
    %v790 = vpack.c.b16 %v786, %v785
    %v796 = vsel %vm658, %v762, 0
    %798 = vmatprep.subr.bf16.mxu0 0
    %799 = vmatpush1.bf16.msra.mxu0 0
    %800 = vmatprep.subr.bf16.mxu0 0
    %801 = vmatpush1.bf16.msra.mxu0 0
    %802 = vmatprep.subr.bf16.mxu0 0
    %803 = vmatpush1.bf16.msra.mxu0 0
    %804 = vmatprep.subr.bf16.mxu0 0
    %805 = vmatpush1.bf16.msra.mxu0 0
    %806 = vmatprep.subr.bf16.mxu0 0
    %807 = vmatpush1.bf16.msra.mxu0 %v790
    %808 = vmatprep.subr.bf16.mxu0 0
    %809 = vmatpush1.bf16.msra.mxu0 %v789
    %810 = vmatprep.subr.bf16.mxu0 0
    %811 = vmatpush1.bf16.msra.mxu0 %v788
    %812 = vmatprep.subr.bf16.mxu0 0
    %813 = vmatpush1.bf16.msra.mxu0 %v787
    %814 = vmatprep.subr.bf16.mxu0 0
    %815 = vmatpush2.bf16.msra.mxu0 0
    %816 = vmatprep.subr.bf16.mxu0 0
    %817 = vmatpush2.bf16.msra.mxu0 0
    %818 = vmatprep.subr.bf16.mxu0 0
    %819 = vmatpush2.bf16.msra.mxu0 0
    %820 = vmatprep.subr.bf16.mxu0 0
    %821 = vmatpush2.bf16.msra.mxu0 0
    %822 = vmatprep.subr.bf16.mxu0 0
    %823 = vmatpush2.bf16.msra.mxu0 0
    %824 = vmatprep.subr.bf16.mxu0 0
    %825 = vmatpush2.bf16.msra.mxu0 0
    %826 = vmatprep.subr.bf16.mxu0 0
    %827 = vmatpush2.bf16.msra.mxu0 0
    %828 = vmatprep.subr.bf16.mxu0 0
    %829 = vmatpush2.bf16.msra.mxu0 0
    %830 = vmatprep.mubr.bf16.mxu0 0
    %831 = vmatmul.mubr.bf16.gmra.mxu0 %v796
    %v832 = vpop.f32.mrf.mxu0
    %v833 = vadd.f32 0.0, %v832
    %v834 = vpop.f32.mrf.mxu0
    %v835 = vpop.f32.mrf.mxu0
    %v836 = vadd.f32 0.0, %v835
    %v837 = vpop.f32.mrf.mxu0
    %838 = vdwg.mxu0
    %v839 = vpack.c.bf16 %v836, %v833
    %842 = vrot.lane.b32.xlu0 %v833, 96
    %v843 = vpop.permute.xlu0 %842
    %844 = vrot.lane.b32.xlu0 %v836, 96
    %v845 = vpop.permute.xlu0 %844
    %848 = vmatprep.subr.bf16.mxu0 0
    %849 = vmatpush1.bf16.msra.mxu0 0
    %850 = vmatprep.subr.bf16.mxu0 0
    %851 = vmatpush1.bf16.msra.mxu0 0
    %852 = vmatprep.subr.bf16.mxu0 0
    %853 = vmatpush1.bf16.msra.mxu0 0
    %854 = vmatprep.subr.bf16.mxu0 0
    %855 = vmatpush1.bf16.msra.mxu0 0
    %856 = vmatprep.subr.bf16.mxu0 0
    %857 = vmatpush1.bf16.msra.mxu0 0
    %858 = vmatprep.subr.bf16.mxu0 0
    %859 = vmatpush1.bf16.msra.mxu0 0
    %860 = vmatprep.subr.bf16.mxu0 0
    %861 = vmatpush1.bf16.msra.mxu0 0
    %862 = vmatprep.subr.bf16.mxu0 0
    %863 = vmatpush1.bf16.msra.mxu0 %v839
    %864 = vmatprep.subr.bf16.mxu0 0
    %865 = vmatpush2.bf16.msra.mxu0 0
    %866 = vmatprep.subr.bf16.mxu0 0
    %867 = vmatpush2.bf16.msra.mxu0 0
    %868 = vmatprep.subr.bf16.mxu0 0
    %869 = vmatpush2.bf16.msra.mxu0 0
    %870 = vmatprep.subr.bf16.mxu0 0
    %871 = vmatpush2.bf16.msra.mxu0 0
    %872 = vmatprep.subr.bf16.mxu0 0
    %873 = vmatpush2.bf16.msra.mxu0 0
    %874 = vmatprep.subr.bf16.mxu0 0
    %875 = vmatpush2.bf16.msra.mxu0 0
    %876 = vmatprep.subr.bf16.mxu0 0
    %877 = vmatpush2.bf16.msra.mxu0 0
    %878 = vmatprep.subr.bf16.mxu0 0
    %879 = vmatpush2.bf16.msra.mxu0 0
    %880 = vmatprep.mubr.bf16.mxu0 0
    %881 = vmatmul.mubr.bf16.gmra.mxu0 %v573
    %v882 = vpop.f32.mrf.mxu0
    %v883 = vadd.f32 %v843, %v882
    %v884 = vpop.f32.mrf.mxu0
    %v885 = vpop.f32.mrf.mxu0
    %v886 = vadd.f32 %v845, %v885
    %v887 = vpop.f32.mrf.mxu0
    %888 = vdwg.mxu0
    %v889 = vld [vmem:[#allocation8 + $0x8] sm:$0x1]
    %v890 = vlaneseq
    %v891 = vshrl.u32 %v890, 7
    %v892 = vsub.s32 0, %v891
    %v893 = vrot.slane %v889, %v892
    %v894 = vadd.f32 %v883, %v893
    %v895 = vadd.f32 %v886, %v893
    %v896 = vmax.f32 %v894, 0.0
    %v897 = vmax.f32 %v895, 0.0
    %v898 = vsel %vm106, %v896, 0.0
    %v899 = vsel %vm106, %v897, 0.0
    %v900 = vadd.f32 %v898, %v899
    %v901 = vrot.slane %v900, 4
    %v902 = vadd.f32 %v900, %v901
    %v903 = vrot.slane %v902, 2
    %v904 = vadd.f32 %v902, %v903
    %v905 = vrot.slane %v904, 1
    %v906 = vadd.f32 %v904, %v905
    %v907 = vrcp.pop 16.0
    %v908 = vmul.f32 %v906, %v907
    %v909 = vpack.c.bf16 %v908, %v908
    %v910 = vld [vmem:[#allocation7 + $0xa0] sm:$0xf]
    %v911 = vld [vmem:[#allocation7 + $0xa4] sm:$0xf]
    %v912 = vld [vmem:[#allocation7 + $0xa8] sm:$0xf]
    %v913 = vld [vmem:[#allocation7 + $0xac] sm:$0xf]
    %v914 = vld [vmem:[#allocation8 + $0x9] sm:$0x1]
    %v919 = vunpack.c.l.b16 %v910
    %v920 = vunpack.c.l.b16 %v911
    %v921 = vunpack.c.l.b16 %v912
    %v922 = vunpack.c.l.b16 %v913
    %v923 = vpack.c.b16 %v920, %v919
    %v924 = vpack.c.b16 %v922, %v921
    %v928 = vsel %vm106, %v909, 0
    %930 = vmatprep.subr.bf16.mxu0 0
    %931 = vmatpush1.bf16.msra.mxu0 0
    %932 = vmatprep.subr.bf16.mxu0 0
    %933 = vmatpush1.bf16.msra.mxu0 0
    %934 = vmatprep.subr.bf16.mxu0 0
    %935 = vmatpush1.bf16.msra.mxu0 0
    %936 = vmatprep.subr.bf16.mxu0 0
    %937 = vmatpush1.bf16.msra.mxu0 0
    %938 = vmatprep.subr.bf16.mxu0 0
    %939 = vmatpush1.bf16.msra.mxu0 0
    %940 = vmatprep.subr.bf16.mxu0 0
    %941 = vmatpush1.bf16.msra.mxu0 0
    %942 = vmatprep.subr.bf16.mxu0 0
    %943 = vmatpush1.bf16.msra.mxu0 %v924
    %944 = vmatprep.subr.bf16.mxu0 0
    %945 = vmatpush1.bf16.msra.mxu0 %v923
    %946 = vmatprep.subr.bf16.mxu0 0
    %947 = vmatpush2.bf16.msra.mxu0 0
    %948 = vmatprep.subr.bf16.mxu0 0
    %949 = vmatpush2.bf16.msra.mxu0 0
    %950 = vmatprep.subr.bf16.mxu0 0
    %951 = vmatpush2.bf16.msra.mxu0 0
    %952 = vmatprep.subr.bf16.mxu0 0
    %953 = vmatpush2.bf16.msra.mxu0 0
    %954 = vmatprep.subr.bf16.mxu0 0
    %955 = vmatpush2.bf16.msra.mxu0 0
    %956 = vmatprep.subr.bf16.mxu0 0
    %957 = vmatpush2.bf16.msra.mxu0 0
    %958 = vmatprep.subr.bf16.mxu0 0
    %959 = vmatpush2.bf16.msra.mxu0 0
    %960 = vmatprep.subr.bf16.mxu0 0
    %961 = vmatpush2.bf16.msra.mxu0 0
    %962 = vmatprep.mubr.bf16.mxu0 0
    %963 = vmatmul.mubr.bf16.gmra.mxu0 %v928
    %v964 = vpop.f32.mrf.mxu0
    %v965 = vadd.f32 %v914, %v964
    %v966 = vpop.f32.mrf.mxu0
    %v967 = vpop.f32.mrf.mxu0
    %v968 = vpop.f32.mrf.mxu0
    %969 = vdwg.mxu0
    %v970 = vxor.u32 %v965, 2147483648
    %v971 = vmul.f32 %v970, 1.442695
    %v972 = vpow.pop %v971
    %v973 = vadd.f32 %v972, 1.0
    %v974 = vrcp.pop %v973
    %v975 = vmul.f32 1.0, %v974
    %vm976 = vcmask 24576
    %977 = vst.msk [vmem:[#allocation10] sm:$0x1] %vm976, %v975
    // Predicated region
    $region34: #{forward.1} parent=1 // pred_check
      _
    $region35: #{forward.1} parent=1 // pred_check_branch
      %979 = sbr.rel (0) target = $region37
    $region36: #{forward.1} parent=1 // pred_region
      %s981 = ssub.s32 16, 16
      %982 = vsyncadd [#allocation4], %s981
      %s984 = sshll.u32 [#allocation10], 4
      %s985 = int_to_ptr.vmem [resolvable:$true] %s984
      %987 = dma.vmem_to_hbm [thread:$0]  %s985, 16, %s4, [#allocation4]
    $region37: #{forward.1} parent=1 // pred_fallthru
      _
    // Predicated region
    $region38: #{forward.1} parent=1 // pred_check
      _
    $region39: #{forward.1} parent=1 // pred_check_branch
      %989 = sbr.rel (0) target = $region41
    $region40: #{forward.1} parent=1 // pred_region
      _
    $region41: #{forward.1} parent=1 // pred_fallthru
      _
    // Predicated region
    $region42: #{forward.1} parent=1 // pred_check
      _
    $region43: #{forward.1} parent=1 // pred_check_branch
      %991 = sbr.rel (0) target = $region45
    $region44: #{forward.1} parent=1 // pred_region
      %992 = dma.done [#allocation4], 16
    $region45: #{forward.1} parent=1 // pred_fallthru
      _
    // Predicated region
    $region46: #{forward.1} parent=1 // pred_check
      _
    $region47: #{forward.1} parent=1 // pred_check_branch
      %994 = sbr.rel (0) target = $region49
    $region48: #{forward.1} parent=1 // pred_region
      _
    $region49: #{forward.1} parent=1 // pred_fallthru
      _
    %995 = vsyncpa [#allocation3], 1
    %996 = vsyncpa [#allocation6], 1
    %997 = vsyncpa [#allocation9], 1
    %998 = vsyncpa [#allocation4], 1

</llo_original>
